<compile_context>
chip_gen: v6e
topology: v6e:2x2x1
jax: 0.10.0
libtpu: 0.0.40
codegen_flags: <defaults>
</compile_context>

<pallas_src>
import jax
import jax.numpy as jnp
from jax.experimental import pallas as pl
from jax.experimental.pallas import tpu as pltpu


# ---------------------------------------------------------------------------
# Kernels
# ---------------------------------------------------------------------------

def _fc2_and_q_head(h1_f32, w2_bf16, b2_ref, wq_ref, bq_ref, q_ref):
    """Shared fc2 + ReLU + q-head epilogue (bf16 MXU dot, f32 VPU epilogue)."""
    h2 = jnp.dot(h1_f32.astype(jnp.bfloat16), w2_bf16,
                 preferred_element_type=jnp.float32)
    h2 = jnp.maximum(h2 + b2_ref[...], 0.0)
    # q head (N=1): VPU multiply + cross-lane reduce; avoids a 1-lane MXU matmul.
    q = jnp.sum(h2 * wq_ref[...], axis=-1, keepdims=True) + bq_ref[0, 0]
    q_ref[...] = q.astype(q_ref.dtype)


def critic_kernel_pipelined(x_ref, w1_ref, b1_ref, w2_ref, b2_ref, wq_ref, bq_ref,
                            q_ref):
    """Multi-step grid path: all weights VMEM-resident via constant-index BlockSpecs."""
    h1 = jnp.dot(x_ref[...].astype(jnp.bfloat16), w1_ref[...],
                 preferred_element_type=jnp.float32)
    h1 = jnp.maximum(h1 + b1_ref[...], 0.0)          # f32 epilogue (v5e-safe)
    _fc2_and_q_head(h1, w2_ref[...], b2_ref, wq_ref, bq_ref, q_ref)


def critic_kernel_overlap(x_ref, w1_ref, b1_ref, w2_hbm, b2_ref, wq_ref, bq_ref,
                          q_ref, w2_vmem, dma_sem):
    """grid==1 path: stream the dominant W2 transfer manually and hide it
    under the layer-1 compute (BlockSpec pipelining has nothing to overlap here)."""
    w2_copy = pltpu.make_async_copy(w2_hbm, w2_vmem, dma_sem)
    w2_copy.start()

    h1 = jnp.dot(x_ref[...].astype(jnp.bfloat16), w1_ref[...],
                 preferred_element_type=jnp.float32)
    h1 = jnp.maximum(h1 + b1_ref[...], 0.0)

    w2_copy.wait()
    _fc2_and_q_head(h1, w2_vmem[...], b2_ref, wq_ref, bq_ref, q_ref)


# ---------------------------------------------------------------------------
# Wrapper
# ---------------------------------------------------------------------------

def _choose_tile(batch):
    """Pick the batch tile TM; the grid is (B // TM,).

    * ragged (B % 8 != 0) or tiny (B < 16) batches: one full-batch block
      (grid==1 -> the overlap kernel hides the W2 DMA under layer-1 compute).
    * otherwise: largest multiple-of-8 divisor of B, capped at 512 rows, that
      still leaves >= 2 grid steps (no TM=8 fallthrough, high MXU M-occupancy,
      and v7x megacore sharding keeps both TensorCores busy).
    """
    if batch % 8 != 0 or batch < 16:
        return batch
    cap = min(512, batch // 2)
    best = 8
    for tm in range(8, cap + 1, 8):
        if batch % tm == 0:
            best = tm
    return best


def critic_forward(state, action, params):
    """state: (B, S) f32, action: (B, A) f32 -> q: (B, 1) f32."""
    w1, b1, w2, b2, wq, bq = params
    B, S = state.shape
    A = action.shape[1]
    IN = S + A
    FC1 = w1.shape[1]
    FC2 = w2.shape[1]

    # fc1's concat happens once here (one cheap XLA op); the kernel then runs a
    # single (TM, S+A) x (S+A, FC1) matmul instead of two tiny-K matmuls.
    x = jnp.concatenate([state, action], axis=1)

    TM = _choose_tile(B)
    grid = (B // TM,)

    flops = 2 * B * (IN * FC1 + FC1 * FC2 + FC2)
    bytes_accessed = (
        (w1.size + w2.size) * 2                          # bf16 weights
        + (b1.size + b2.size + wq.size + bq.size) * 4    # f32 biases / q row
        + (x.size + B) * 4                               # f32 activations in/out
    )
    cost = pl.CostEstimate(flops=flops, transcendentals=0,
                           bytes_accessed=bytes_accessed)
    cparams = pltpu.CompilerParams(dimension_semantics=("parallel",))

    resident = lambda i: (0, 0)   # same block every grid step -> stays VMEM-resident

    def res_spec(shape):
        # Constant blocks are never re-fetched: single-buffer them (no 2x VMEM,
        # no buffer-swap bookkeeping).
        return pl.BlockSpec(shape, resident, pipeline_mode=pl.Buffered(1))

    if grid[0] == 1:
        # Tiny / ragged batch: one grid step, manual W2 DMA overlapped with layer 1.
        return pl.pallas_call(
            critic_kernel_overlap,
            out_shape=jax.ShapeDtypeStruct((B, 1), jnp.float32),
            grid=grid,
            in_specs=[
                pl.BlockSpec((TM, IN), lambda i: (0, 0)),           # packed [s|a]
                res_spec((IN, FC1)),                                # W1   (bf16)
                res_spec((1, FC1)),                                 # b1   (f32)
                pl.BlockSpec(memory_space=pl.ANY),                  # W2 stays in HBM
                res_spec((1, FC2)),                                 # b2   (f32)
                res_spec((1, FC2)),                                 # wq   (f32 row)
                pl.BlockSpec(memory_space=pltpu.MemorySpace.SMEM),  # bq scalar
            ],
            out_specs=pl.BlockSpec((TM, 1), lambda i: (0, 0)),
            scratch_shapes=[pltpu.VMEM((FC1, FC2), jnp.bfloat16),
                            pltpu.SemaphoreType.DMA(())],
            compiler_params=cparams,
            cost_estimate=cost,
        )(x, w1, b1, w2, b2, wq, bq)

    # Multi-step grid: weights resident in VMEM, batch tiles pipelined,
    # steps sharded across TensorCores on v7x.
    return pl.pallas_call(
        critic_kernel_pipelined,
        out_shape=jax.ShapeDtypeStruct((B, 1), jnp.float32),
        grid=grid,
        in_specs=[
            pl.BlockSpec((TM, IN), lambda i: (i, 0)),               # packed [s|a] tile
            res_spec((IN, FC1)),                                    # W1   (bf16)
            res_spec((1, FC1)),                                     # b1   (f32)
            res_spec((FC1, FC2)),                                   # W2   (bf16)
            res_spec((1, FC2)),                                     # b2   (f32)
            res_spec((1, FC2)),                                     # wq   (f32 row)
            pl.BlockSpec(memory_space=pltpu.MemorySpace.SMEM),      # bq scalar
        ],
        out_specs=pl.BlockSpec((TM, 1), lambda i: (i, 0)),
        compiler_params=cparams,
        cost_estimate=cost,
    )(x, w1, b1, w2, b2, wq, bq)


# ---------------------------------------------------------------------------
# Params / reference
# ---------------------------------------------------------------------------

def init_params(key, state_dims, n_actions, fc1_dims=512, fc2_dims=512):
    """Deterministic synthetic params in the kernel's layout:
       - weights pre-transposed to (in, out) = PyTorch W.T
       - W1 / W2 stored in bf16 (f32 accumulation happens on the MXU in-kernel)
       - q-head weight kept as an f32 row (1, fc2); bq as a (1, 1) f32 SMEM scalar."""
    k1, k2, k3, k4, k5, k6 = jax.random.split(key, 6)

    def lin(kw, kb, fan_in, fan_out):
        bound = 1.0 / jnp.sqrt(float(fan_in))
        w = jax.random.uniform(kw, (fan_in, fan_out), jnp.float32, -bound, bound)
        b = jax.random.uniform(kb, (1, fan_out), jnp.float32, -bound, bound)
        return w, b

    in_dim = state_dims + n_actions
    w1, b1 = lin(k1, k2, in_dim, fc1_dims)
    w2, b2 = lin(k3, k4, fc1_dims, fc2_dims)
    wq, bq = lin(k5, k6, fc2_dims, 1)

    return (w1.astype(jnp.bfloat16), b1,
            w2.astype(jnp.bfloat16), b2,
            wq.T, bq)


def reference_forward(state, action, params):
    """Pure-JAX reference (f32 math on the same bf16-rounded weights)."""
    w1, b1, w2, b2, wq, bq = params
    x = jnp.concatenate([state, action], axis=1)
    h1 = jnp.maximum(x @ w1.astype(jnp.float32) + b1, 0.0)
    h2 = jnp.maximum(h1 @ w2.astype(jnp.float32) + b2, 0.0)
    return h2 @ wq.T + bq


if __name__ == "__main__":
    # Shapes consistent with the module: state_dims=(24,), n_actions=(8,), fc=512.
    S, A = 24, 8
    FC1, FC2 = 512, 512

    key = jax.random.PRNGKey(0)
    kp, kd = jax.random.split(key)
    params = init_params(kp, S, A, FC1, FC2)

    # Exercise both code paths:
    #   B=8  -> grid==1 overlap kernel (manual W2 DMA under layer-1 compute)
    #   B=64 -> 2-step pipelined kernel with single-buffered resident weights
    for B in (8, 64):
        ksb, kab = jax.random.split(jax.random.fold_in(kd, B))
        state = jax.random.normal(ksb, (B, S), jnp.float32)
        action = jax.random.normal(kab, (B, A), jnp.float32)

        q = jax.block_until_ready(critic_forward(state, action, params))
        q_ref = reference_forward(state, action, params)

        assert q.shape == (B, 1)
        # bf16 activations/weights in the kernel vs. f32 reference -> looser tolerance.
        assert jnp.allclose(q, q_ref, atol=5e-2, rtol=5e-2), (B, q, q_ref)

    print("KERNEL_OK")
</pallas_src>

<mosaic_0001>
module attributes {stable_mosaic.version = 11 : i64} {
  func.func @critic_kernel_overlap(%arg0: i32, %arg1: memref<8x32xf32, #tpu.memory_space<vmem>>, %arg2: memref<32x512xbf16, #tpu.memory_space<vmem>>, %arg3: memref<1x512xf32, #tpu.memory_space<vmem>>, %arg4: memref<512x512xbf16, #tpu.memory_space<any>>, %arg5: memref<1x512xf32, #tpu.memory_space<vmem>>, %arg6: memref<1x512xf32, #tpu.memory_space<vmem>>, %arg7: memref<1x1xf32, #tpu.memory_space<smem>>, %arg8: memref<8x1xf32, #tpu.memory_space<vmem>>, %arg9: memref<512x512xbf16, #tpu.memory_space<vmem>>, %arg10: memref<!tpu.dma_semaphore, #tpu.memory_space<semaphore_mem>>) attributes {dimension_semantics = [#tpu.dimension_semantics<parallel>], iteration_bounds = array<i64: 1>, scalar_prefetch = 0 : i64, scratch_operands = 2 : i64, tpu.core_type = #tpu.core_type<tc>, window_params = [{pipeline_mode = #tpu.pipeline_mode<synchronous>, transform_indices = @transform_0, window_bounds = array<i64: 8, 32>}, {pipeline_mode = #tpu.pipeline_mode<synchronous>, transform_indices = @transform_1, window_bounds = array<i64: 32, 512>}, {pipeline_mode = #tpu.pipeline_mode<synchronous>, transform_indices = @transform_2, window_bounds = array<i64: 1, 512>}, {}, {pipeline_mode = #tpu.pipeline_mode<synchronous>, transform_indices = @transform_4, window_bounds = array<i64: 1, 512>}, {pipeline_mode = #tpu.pipeline_mode<synchronous>, transform_indices = @transform_5, window_bounds = array<i64: 1, 512>}, {transform_indices = @transform_6, window_bounds = array<i64: 1, 1>}, {pipeline_mode = #tpu.pipeline_mode<synchronous>, transform_indices = @transform_7, window_bounds = array<i64: 8, 1>}]} {
    tpu.enqueue_dma source(%arg4 : memref<512x512xbf16, #tpu.memory_space<any>>) target(%arg9 : memref<512x512xbf16, #tpu.memory_space<vmem>>) target_semaphore(%arg10 : memref<!tpu.dma_semaphore, #tpu.memory_space<semaphore_mem>>)
    %c0 = arith.constant 0 : index
    %c0_0 = arith.constant 0 : index
    %0 = vector.load %arg1[%c0, %c0_0] : memref<8x32xf32, #tpu.memory_space<vmem>>, vector<8x32xf32>
    %1 = arith.truncf %0 : vector<8x32xf32> to vector<8x32xbf16>
    %c0_1 = arith.constant 0 : index
    %c0_2 = arith.constant 0 : index
    %2 = vector.load %arg2[%c0_1, %c0_2] : memref<32x512xbf16, #tpu.memory_space<vmem>>, vector<32x512xbf16>
    %cst = arith.constant dense<0.000000e+00> : vector<8x512xf32>
    %3 = tpu.matmul %1, %2, %cst {dimension_numbers = #tpu.dot_dimension_numbers<[1], [0], [0], [1], [0, 0, 1, 1], [], []>} : vector<8x32xbf16>, vector<32x512xbf16>, vector<8x512xf32> -> vector<8x512xf32>
    %c0_3 = arith.constant 0 : index
    %c0_4 = arith.constant 0 : index
    %4 = vector.load %arg3[%c0_3, %c0_4] : memref<1x512xf32, #tpu.memory_space<vmem>>, vector<1x512xf32>
    %5 = vector.broadcast %4 : vector<1x512xf32> to vector<8x512xf32>
    %6 = arith.addf %3, %5 : vector<8x512xf32>
    %cst_5 = arith.constant 0.000000e+00 : f32
    %7 = vector.broadcast %cst_5 : f32 to vector<8x512xf32>
    %8 = arith.maximumf %6, %7 : vector<8x512xf32>
    tpu.wait_dma2 semaphore(%arg10 : memref<!tpu.dma_semaphore, #tpu.memory_space<semaphore_mem>>) src(%arg4 : memref<512x512xbf16, #tpu.memory_space<any>>) dst(%arg9 : memref<512x512xbf16, #tpu.memory_space<vmem>>)
    %c0_6 = arith.constant 0 : index
    %c0_7 = arith.constant 0 : index
    %9 = vector.load %arg9[%c0_6, %c0_7] : memref<512x512xbf16, #tpu.memory_space<vmem>>, vector<512x512xbf16>
    %10 = arith.truncf %8 : vector<8x512xf32> to vector<8x512xbf16>
    %cst_8 = arith.constant dense<0.000000e+00> : vector<8x512xf32>
    %11 = tpu.matmul %10, %9, %cst_8 {dimension_numbers = #tpu.dot_dimension_numbers<[1], [0], [0], [1], [0, 0, 1, 1], [], []>} : vector<8x512xbf16>, vector<512x512xbf16>, vector<8x512xf32> -> vector<8x512xf32>
    %c0_9 = arith.constant 0 : index
    %c0_10 = arith.constant 0 : index
    %12 = vector.load %arg5[%c0_9, %c0_10] : memref<1x512xf32, #tpu.memory_space<vmem>>, vector<1x512xf32>
    %13 = vector.broadcast %12 : vector<1x512xf32> to vector<8x512xf32>
    %14 = arith.addf %11, %13 : vector<8x512xf32>
    %cst_11 = arith.constant 0.000000e+00 : f32
    %15 = vector.broadcast %cst_11 : f32 to vector<8x512xf32>
    %16 = arith.maximumf %14, %15 : vector<8x512xf32>
    %c0_12 = arith.constant 0 : index
    %c0_13 = arith.constant 0 : index
    %17 = vector.load %arg6[%c0_12, %c0_13] : memref<1x512xf32, #tpu.memory_space<vmem>>, vector<1x512xf32>
    %18 = vector.broadcast %17 : vector<1x512xf32> to vector<8x512xf32>
    %19 = arith.mulf %16, %18 : vector<8x512xf32>
    %cst_14 = arith.constant dense<0.000000e+00> : vector<8xf32>
    %20 = vector.multi_reduction <add>, %19, %cst_14 [1] : vector<8x512xf32> to vector<8xf32>
    %21 = vector.shape_cast %20 : vector<8xf32> to vector<8x1xf32>
    %c0_15 = arith.constant 0 : index
    %c0_16 = arith.constant 0 : index
    %22 = memref.load %arg7[%c0_15, %c0_16] : memref<1x1xf32, #tpu.memory_space<smem>>
    %23 = vector.broadcast %22 : f32 to vector<8x1xf32>
    %24 = arith.addf %21, %23 : vector<8x1xf32>
    %c0_17 = arith.constant 0 : index
    %c0_18 = arith.constant 0 : index
    %25 = vector.load %arg8[%c0_17, %c0_18] : memref<8x1xf32, #tpu.memory_space<vmem>>, vector<8x1xf32>
    tpu.vector_store %arg8[%c0_17, %c0_18], %24 {strides = array<i32>} : memref<8x1xf32, #tpu.memory_space<vmem>>, vector<8x1xf32>,
    return
  }
  func.func @transform_0(%arg0: i32) -> (i32, i32) {
    %c0_i32 = arith.constant 0 : i32
    %c0_i32_0 = arith.constant 0 : i32
    %c0_i32_1 = arith.constant 0 : i32
    return %c0_i32, %c0_i32_0 : i32, i32
  }
  func.func @transform_1(%arg0: i32) -> (i32, i32) {
    %c0_i32 = arith.constant 0 : i32
    %c0_i32_0 = arith.constant 0 : i32
    %c0_i32_1 = arith.constant 0 : i32
    return %c0_i32, %c0_i32_0 : i32, i32
  }
  func.func @transform_2(%arg0: i32) -> (i32, i32) {
    %c0_i32 = arith.constant 0 : i32
    %c0_i32_0 = arith.constant 0 : i32
    %c0_i32_1 = arith.constant 0 : i32
    return %c0_i32, %c0_i32_0 : i32, i32
  }
  func.func @transform_4(%arg0: i32) -> (i32, i32) {
    %c0_i32 = arith.constant 0 : i32
    %c0_i32_0 = arith.constant 0 : i32
    %c0_i32_1 = arith.constant 0 : i32
    return %c0_i32, %c0_i32_0 : i32, i32
  }
  func.func @transform_5(%arg0: i32) -> (i32, i32) {
    %c0_i32 = arith.constant 0 : i32
    %c0_i32_0 = arith.constant 0 : i32
    %c0_i32_1 = arith.constant 0 : i32
    return %c0_i32, %c0_i32_0 : i32, i32
  }
  func.func @transform_6(%arg0: i32) -> (i32, i32) {
    %c0_i32 = arith.constant 0 : i32
    %c0_i32_0 = arith.constant 0 : i32
    %c0_i32_1 = arith.constant 0 : i32
    return %c0_i32, %c0_i32_0 : i32, i32
  }
  func.func @transform_7(%arg0: i32) -> (i32, i32) {
    %c0_i32 = arith.constant 0 : i32
    %c0_i32_0 = arith.constant 0 : i32
    %c0_i32_1 = arith.constant 0 : i32
    return %c0_i32, %c0_i32_0 : i32, i32
  }
}

</mosaic_0001>

<llo_original>
// kernel: tpu_custom_call.1
$region0: #{tpu_custom_call.1}
  #allocation0 [shape = 'u32[]', space=smem, size = 0x4, offset = 0x4, fixed_abs, tag = 'smem constant byte address 0x4 - core index']
  #allocation1 [shape = 'u32[144,128]{1,0:T(1,128)}', space=vmem, size = 0x12000, scoped, tag = 'internal scratch']
  #allocation2 [shape = 'bf16[512,512]{1,0:T(8,128)(2,1)}', space=vmem, size = 0x80000, scoped, tag = 'scratch operand']
  #allocation3 [shape = 's32[1]{0}', space=sflag, size = 0x4, scoped, tag = 'scratch operand']
  #allocation4 [shape = 'f32[1,1]{1,0:T(1,128)S(6)}', space=smem, size = 0x200, scoped, tag = 'scoped memory for tpu_custom_call.1']
  #allocation10 [shape = 's32[]', space=sflag, size = 0x4, offset = 0, fixed_abs, tag = 'sflag constant byte address 0x0 - dummy sync flag']
  #allocation11 [shape = 's32[]', space=sflag, size = 0x4, offset = 0, fixed_abs, tag = 'sflag constant byte address 0x0 - dummy sync flag']
  #allocation12 [shape = 'u32[]', space=smem, size = 0x4, offset = 0x44, fixed_abs, tag = 'smem constant byte address 0x44 - assertion arg 0']
  #allocation13 [shape = 'u32[]', space=smem, size = 0x4, offset = 0x48, fixed_abs, tag = 'smem constant byte address 0x48 - assertion arg 1']
  %s0 = inlined_call_operand.hbm [shape: f32[8,32], index: 0, kind: input, shape index: {}]
  %s1 = inlined_call_operand.hbm [shape: bf16[32,512], index: 1, kind: input, shape index: {}]
  %s2 = inlined_call_operand.vmem [shape: f32[1,512], index: 2, kind: input, shape index: {}]
  %s3 = inlined_call_operand.hbm [shape: bf16[512,512], index: 3, kind: input, shape index: {}]
  %s4 = inlined_call_operand.vmem [shape: f32[1,512], index: 4, kind: input, shape index: {}]
  %s5 = inlined_call_operand.hbm [shape: f32[1,512], index: 5, kind: input, shape index: {}]
  %s6 = inlined_call_operand.<no memory space> [shape: f32[1,1], index: 6, kind: input, shape index: {}]
  %s7 = inlined_call_operand.vmem [shape: f32[8,1], index: 7, kind: output, shape index: {}]
  %s8 = sld [smem:[#allocation0]]
  $region50: #{tpu_custom_call.1} parent=0
    _
  %s10 = ssub.s32 1, %s8
  %s11 = scalar_select 0, %s10, %s8
  %12 = sst [smem:[#allocation4]] %s6
  $region1: #{tpu_custom_call.1} parent=0
    #allocation5 [shape = 'u8[4096]{0}', space=vmem, size = 0x1000, scoped, tag = 'input window, operand 0, single buffered']
    #allocation6 [shape = 's32[1]{0}', space=sflag, size = 0x4, scoped, tag = 'scoped memory for tpu_custom_call.1']
    #allocation7 [shape = 'u8[32768]{0}', space=vmem, size = 0x8000, scoped, tag = 'input window, operand 1, single buffered']
    #allocation8 [shape = 's32[1]{0}', space=sflag, size = 0x4, scoped, tag = 'scoped memory for tpu_custom_call.1']
    #allocation9 [shape = 'u8[2048]{0}', space=vmem, size = 0x800, scoped, tag = 'input window, operand 5, single buffered']
    %13 = vsyncpa [#allocation6], 0
    %14 = vsyncpa [#allocation8], 0
    // Predicated region
    $region2: #{tpu_custom_call.1} parent=1 // pred_check
      _
    $region3: #{tpu_custom_call.1} parent=1 // pred_check_branch
      %16 = sbr.rel (0) target = $region5
    $region4: #{tpu_custom_call.1} parent=1 // pred_region
      %s18 = ssub.s32 128, 128
      %19 = vsyncadd [#allocation6], %s18
      %s21 = sshll.u32 [#allocation5], 4
      %s22 = int_to_ptr.vmem [resolvable:$true] %s21
      %24 = dma.hbm_to_vmem [thread:$0]  %s0, 128, %s22, [#allocation6]
    $region5: #{tpu_custom_call.1} parent=1 // pred_fallthru
      _
    // Predicated region
    $region6: #{tpu_custom_call.1} parent=1 // pred_check
      _
    $region7: #{tpu_custom_call.1} parent=1 // pred_check_branch
      %26 = sbr.rel (0) target = $region9
    $region8: #{tpu_custom_call.1} parent=1 // pred_region
      %s28 = ssub.s32 1024, 1024
      %29 = vsyncadd [#allocation8], %s28
      %s30 = sshll.u32 [#allocation7], 4
      %s31 = int_to_ptr.vmem [resolvable:$true] %s30
      %36 = dma.hbm_to_vmem [thread:$0]  %s1, 1024, %s31, [#allocation8], 256, 256, 16
    $region9: #{tpu_custom_call.1} parent=1 // pred_fallthru
      _
    // Predicated region
    $region10: #{tpu_custom_call.1} parent=1 // pred_check
      _
    $region11: #{tpu_custom_call.1} parent=1 // pred_check_branch
      %38 = sbr.rel (0) target = $region13
    $region12: #{tpu_custom_call.1} parent=1 // pred_region
      _
    $region13: #{tpu_custom_call.1} parent=1 // pred_fallthru
      _
    // Predicated region
    $region14: #{tpu_custom_call.1} parent=1 // pred_check
      _
    $region15: #{tpu_custom_call.1} parent=1 // pred_check_branch
      %40 = sbr.rel (0) target = $region17
    $region16: #{tpu_custom_call.1} parent=1 // pred_region
      _
    $region17: #{tpu_custom_call.1} parent=1 // pred_fallthru
      _
    // Predicated region
    $region18: #{tpu_custom_call.1} parent=1 // pred_check
      _
    $region19: #{tpu_custom_call.1} parent=1 // pred_check_branch
      %42 = sbr.rel (0) target = $region21
    $region20: #{tpu_custom_call.1} parent=1 // pred_region
      %s44 = ssub.s32 64, 64
      %45 = vsyncadd [#allocation8], %s44
      %s47 = sshll.u32 [#allocation9], 4
      %s48 = int_to_ptr.vmem [resolvable:$true] %s47
      %50 = dma.hbm_to_vmem [thread:$0]  %s5, 64, %s48, [#allocation8]
    $region21: #{tpu_custom_call.1} parent=1 // pred_fallthru
      _
    // Predicated region
    $region22: #{tpu_custom_call.1} parent=1 // pred_check
      _
    $region23: #{tpu_custom_call.1} parent=1 // pred_check_branch
      %52 = sbr.rel (0) target = $region25
    $region24: #{tpu_custom_call.1} parent=1 // pred_region
      _
    $region25: #{tpu_custom_call.1} parent=1 // pred_fallthru
      _
    // Predicated region
    $region26: #{tpu_custom_call.1} parent=1 // pred_check
      _
    $region27: #{tpu_custom_call.1} parent=1 // pred_check_branch
      %54 = sbr.rel (0) target = $region29
    $region28: #{tpu_custom_call.1} parent=1 // pred_region
      %55 = dma.done [#allocation6], 128
    $region29: #{tpu_custom_call.1} parent=1 // pred_fallthru
      _
    // Predicated region
    $region30: #{tpu_custom_call.1} parent=1 // pred_check
      _
    $region31: #{tpu_custom_call.1} parent=1 // pred_check_branch
      %57 = sbr.rel (0) target = $region33
    $region32: #{tpu_custom_call.1} parent=1 // pred_region
      %58 = dma.done [#allocation8], 1024
    $region33: #{tpu_custom_call.1} parent=1 // pred_fallthru
      _
    // Predicated region
    $region34: #{tpu_custom_call.1} parent=1 // pred_check
      _
    $region35: #{tpu_custom_call.1} parent=1 // pred_check_branch
      %60 = sbr.rel (0) target = $region37
    $region36: #{tpu_custom_call.1} parent=1 // pred_region
      %61 = dma.done [#allocation8], 64
    $region37: #{tpu_custom_call.1} parent=1 // pred_fallthru
      _
    // Predicated region
    $region38: #{tpu_custom_call.1} parent=1 // pred_check
      _
    $region39: #{tpu_custom_call.1} parent=1 // pred_check_branch
      %64 = sbr.rel target = $region41
    $region40: #{tpu_custom_call.1} parent=1 // pred_region
      %65 = sst [smem:[#allocation12]] [#allocation11]
      %66 = sst [smem:[#allocation13]] [#allocation10]
    $region41: #{tpu_custom_call.1} parent=1 // pred_fallthru
      _
    %68 = shalt.err (0)
    %s70 = sshll.u32 [#allocation2], 4
    %s71 = int_to_ptr.vmem [resolvable:$true] %s70
    %73 = dma.hbm_to_vmem [thread:$0]  %s3, 16384, %s71, [#allocation3]
    %v74 = vld [vmem:[#allocation5] sm:$0xff]
    %v75 = vpack.c.bf16 %v74, %v74
    %v76 = vld [vmem:[#allocation7] sm:$0xff]
    %v77 = vld [vmem:[#allocation7 + $0x8] sm:$0xff]
    %v78 = vld [vmem:[#allocation7 + $0x10] sm:$0xff]
    %v79 = vld [vmem:[#allocation7 + $0x18] sm:$0xff]
    %v80 = vld [vmem:[#allocation7 + $0x20] sm:$0xff]
    %v81 = vld [vmem:[#allocation7 + $0x28] sm:$0xff]
    %v82 = vld [vmem:[#allocation7 + $0x30] sm:$0xff]
    %v83 = vld [vmem:[#allocation7 + $0x38] sm:$0xff]
    %v84 = vld [vmem:[%s2] sm:$0xf]
    %v86 = vlaneseq
    %v87 = vshrl.u32 %v86, 7
    %v88 = vsub.s32 0, %v87
    %v89 = vrot.slane %v84, %v88
    %v90 = vlaneseq
    %v91 = vshrl.u32 %v90, 7
    %v92 = vsub.s32 1, %v91
    %v93 = vrot.slane %v84, %v92
    %v94 = vlaneseq
    %v95 = vshrl.u32 %v94, 7
    %v96 = vsub.s32 2, %v95
    %v97 = vrot.slane %v84, %v96
    %v98 = vlaneseq
    %v99 = vshrl.u32 %v98, 7
    %v100 = vsub.s32 3, %v99
    %v101 = vrot.slane %v84, %v100
    %v114 = vunpack.c.l.b16 %v76
    %v115 = vunpack.c.h.b16 %v76
    %v116 = vunpack.c.l.b16 %v77
    %v117 = vunpack.c.h.b16 %v77
    %v118 = vunpack.c.l.b16 %v78
    %v119 = vunpack.c.h.b16 %v78
    %v120 = vunpack.c.l.b16 %v79
    %v121 = vunpack.c.h.b16 %v79
    %v122 = vunpack.c.l.b16 %v80
    %v123 = vunpack.c.h.b16 %v80
    %v124 = vunpack.c.l.b16 %v81
    %v125 = vunpack.c.h.b16 %v81
    %v126 = vunpack.c.l.b16 %v82
    %v127 = vunpack.c.h.b16 %v82
    %v128 = vunpack.c.l.b16 %v83
    %v129 = vunpack.c.h.b16 %v83
    %v130 = vpack.c.b16 %v118, %v114
    %v131 = vpack.c.b16 %v119, %v115
    %v132 = vpack.c.b16 %v120, %v116
    %v133 = vpack.c.b16 %v121, %v117
    %v134 = vpack.c.b16 %v126, %v122
    %v135 = vpack.c.b16 %v127, %v123
    %v136 = vpack.c.b16 %v128, %v124
    %v137 = vpack.c.b16 %v129, %v125
    %vm146 = vcmask 261120
    %v148 = vsel %vm146, %v75, 0
    %150 = vmatprep.subr.bf16.mxu0 0
    %151 = vmatpush1.bf16.msra.mxu0 0
    %152 = vmatprep.subr.bf16.mxu0 0
    %153 = vmatpush1.bf16.msra.mxu0 0
    %154 = vmatprep.subr.bf16.mxu0 0
    %155 = vmatpush1.bf16.msra.mxu0 0
    %156 = vmatprep.subr.bf16.mxu0 0
    %157 = vmatpush1.bf16.msra.mxu0 0
    %158 = vmatprep.subr.bf16.mxu0 0
    %159 = vmatpush1.bf16.msra.mxu0 0
    %160 = vmatprep.subr.bf16.mxu0 0
    %161 = vmatpush1.bf16.msra.mxu0 0
    %162 = vmatprep.subr.bf16.mxu0 %v135
    %163 = vmatpush1.bf16.msra.mxu0 %v134
    %164 = vmatprep.subr.bf16.mxu0 %v131
    %165 = vmatpush1.bf16.msra.mxu0 %v130
    %166 = vmatprep.subr.bf16.mxu0 0
    %167 = vmatpush2.bf16.msra.mxu0 0
    %168 = vmatprep.subr.bf16.mxu0 0
    %169 = vmatpush2.bf16.msra.mxu0 0
    %170 = vmatprep.subr.bf16.mxu0 0
    %171 = vmatpush2.bf16.msra.mxu0 0
    %172 = vmatprep.subr.bf16.mxu0 0
    %173 = vmatpush2.bf16.msra.mxu0 0
    %174 = vmatprep.subr.bf16.mxu0 0
    %175 = vmatpush2.bf16.msra.mxu0 0
    %176 = vmatprep.subr.bf16.mxu0 0
    %177 = vmatpush2.bf16.msra.mxu0 0
    %178 = vmatprep.subr.bf16.mxu0 0
    %179 = vmatpush2.bf16.msra.mxu0 0
    %180 = vmatprep.subr.bf16.mxu0 0
    %181 = vmatpush2.bf16.msra.mxu0 0
    %182 = vmatprep.mubr.bf16.mxu0 0
    %183 = vmatmul.mubr.bf16.gmra.mxu0 %v148
    %v184 = vpop.f32.mrf.mxu0
    %v185 = vadd.f32 %v89, %v184
    %v186 = vpop.f32.mrf.mxu0
    %v187 = vadd.f32 %v93, %v186
    %v188 = vpop.f32.mrf.mxu0
    %v189 = vpop.f32.mrf.mxu0
    %190 = vdwg.mxu0
    %191 = vmatprep.subr.bf16.mxu0 0
    %192 = vmatpush1.bf16.msra.mxu0 0
    %193 = vmatprep.subr.bf16.mxu0 0
    %194 = vmatpush1.bf16.msra.mxu0 0
    %195 = vmatprep.subr.bf16.mxu0 0
    %196 = vmatpush1.bf16.msra.mxu0 0
    %197 = vmatprep.subr.bf16.mxu0 0
    %198 = vmatpush1.bf16.msra.mxu0 0
    %199 = vmatprep.subr.bf16.mxu0 0
    %200 = vmatpush1.bf16.msra.mxu0 0
    %201 = vmatprep.subr.bf16.mxu0 0
    %202 = vmatpush1.bf16.msra.mxu0 0
    %203 = vmatprep.subr.bf16.mxu0 %v137
    %204 = vmatpush1.bf16.msra.mxu0 %v136
    %205 = vmatprep.subr.bf16.mxu0 %v133
    %206 = vmatpush1.bf16.msra.mxu0 %v132
    %207 = vmatprep.subr.bf16.mxu0 0
    %208 = vmatpush2.bf16.msra.mxu0 0
    %209 = vmatprep.subr.bf16.mxu0 0
    %210 = vmatpush2.bf16.msra.mxu0 0
    %211 = vmatprep.subr.bf16.mxu0 0
    %212 = vmatpush2.bf16.msra.mxu0 0
    %213 = vmatprep.subr.bf16.mxu0 0
    %214 = vmatpush2.bf16.msra.mxu0 0
    %215 = vmatprep.subr.bf16.mxu0 0
    %216 = vmatpush2.bf16.msra.mxu0 0
    %217 = vmatprep.subr.bf16.mxu0 0
    %218 = vmatpush2.bf16.msra.mxu0 0
    %219 = vmatprep.subr.bf16.mxu0 0
    %220 = vmatpush2.bf16.msra.mxu0 0
    %221 = vmatprep.subr.bf16.mxu0 0
    %222 = vmatpush2.bf16.msra.mxu0 0
    %223 = vmatprep.mubr.bf16.mxu0 0
    %224 = vmatmul.mubr.bf16.gmra.mxu0 %v148
    %v225 = vpop.f32.mrf.mxu0
    %v226 = vadd.f32 %v97, %v225
    %v227 = vpop.f32.mrf.mxu0
    %v228 = vadd.f32 %v101, %v227
    %v229 = vpop.f32.mrf.mxu0
    %v230 = vpop.f32.mrf.mxu0
    %231 = vdwg.mxu0
    %v232 = vmax.f32 %v185, 0.0
    %v233 = vmax.f32 %v187, 0.0
    %v234 = vmax.f32 %v226, 0.0
    %v235 = vmax.f32 %v228, 0.0
    %s236 = smul.u32 4, 64
    %s237 = smul.u32 %s236, 4
    %s238 = sshll.u32 %s237, 4
    %239 = dma.done [#allocation3], %s238
    %v240 = vld [vmem:[#allocation2] sm:$0xff]
    %v241 = vld [vmem:[#allocation2 + $0x8] sm:$0xff]
    %v242 = vld [vmem:[#allocation2 + $0x10] sm:$0xff]
    %v243 = vld [vmem:[#allocation2 + $0x18] sm:$0xff]
    %v244 = vld [vmem:[#allocation2 + $0x20] sm:$0xff]
    %v245 = vld [vmem:[#allocation2 + $0x28] sm:$0xff]
    %v246 = vld [vmem:[#allocation2 + $0x30] sm:$0xff]
    %v247 = vld [vmem:[#allocation2 + $0x38] sm:$0xff]
    %v248 = vld [vmem:[#allocation2 + $0x40] sm:$0xff]
    %v249 = vld [vmem:[#allocation2 + $0x48] sm:$0xff]
    %v250 = vld [vmem:[#allocation2 + $0x50] sm:$0xff]
    %v251 = vld [vmem:[#allocation2 + $0x58] sm:$0xff]
    %v252 = vld [vmem:[#allocation2 + $0x60] sm:$0xff]
    %v253 = vld [vmem:[#allocation2 + $0x68] sm:$0xff]
    %v254 = vld [vmem:[#allocation2 + $0x70] sm:$0xff]
    %v255 = vld [vmem:[#allocation2 + $0x78] sm:$0xff]
    %v256 = vld [vmem:[#allocation2 + $0x80] sm:$0xff]
    %v257 = vld [vmem:[#allocation2 + $0x88] sm:$0xff]
    %v258 = vld [vmem:[#allocation2 + $0x90] sm:$0xff]
    %v259 = vld [vmem:[#allocation2 + $0x98] sm:$0xff]
    %v260 = vld [vmem:[#allocation2 + $0xa0] sm:$0xff]
    %v261 = vld [vmem:[#allocation2 + $0xa8] sm:$0xff]
    %v262 = vld [vmem:[#allocation2 + $0xb0] sm:$0xff]
    %v263 = vld [vmem:[#allocation2 + $0xb8] sm:$0xff]
    %v264 = vld [vmem:[#allocation2 + $0xc0] sm:$0xff]
    %v265 = vld [vmem:[#allocation2 + $0xc8] sm:$0xff]
    %v266 = vld [vmem:[#allocation2 + $0xd0] sm:$0xff]
    %v267 = vld [vmem:[#allocation2 + $0xd8] sm:$0xff]
    %v268 = vld [vmem:[#allocation2 + $0xe0] sm:$0xff]
    %v269 = vld [vmem:[#allocation2 + $0xe8] sm:$0xff]
    %v270 = vld [vmem:[#allocation2 + $0xf0] sm:$0xff]
    %v271 = vld [vmem:[#allocation2 + $0xf8] sm:$0xff]
    %v272 = vld [vmem:[#allocation2 + $0x100] sm:$0xff]
    %v273 = vld [vmem:[#allocation2 + $0x108] sm:$0xff]
    %v274 = vld [vmem:[#allocation2 + $0x110] sm:$0xff]
    %v275 = vld [vmem:[#allocation2 + $0x118] sm:$0xff]
    %v276 = vld [vmem:[#allocation2 + $0x120] sm:$0xff]
    %v277 = vld [vmem:[#allocation2 + $0x128] sm:$0xff]
    %v278 = vld [vmem:[#allocation2 + $0x130] sm:$0xff]
    %v279 = vld [vmem:[#allocation2 + $0x138] sm:$0xff]
    %v280 = vld [vmem:[#allocation2 + $0x140] sm:$0xff]
    %v281 = vld [vmem:[#allocation2 + $0x148] sm:$0xff]
    %v282 = vld [vmem:[#allocation2 + $0x150] sm:$0xff]
    %v283 = vld [vmem:[#allocation2 + $0x158] sm:$0xff]
    %v284 = vld [vmem:[#allocation2 + $0x160] sm:$0xff]
    %v285 = vld [vmem:[#allocation2 + $0x168] sm:$0xff]
    %v286 = vld [vmem:[#allocation2 + $0x170] sm:$0xff]
    %v287 = vld [vmem:[#allocation2 + $0x178] sm:$0xff]
    %v288 = vld [vmem:[#allocation2 + $0x180] sm:$0xff]
    %v289 = vld [vmem:[#allocation2 + $0x188] sm:$0xff]
    %v290 = vld [vmem:[#allocation2 + $0x190] sm:$0xff]
    %v291 = vld [vmem:[#allocation2 + $0x198] sm:$0xff]
    %v292 = vld [vmem:[#allocation2 + $0x1a0] sm:$0xff]
    %v293 = vld [vmem:[#allocation2 + $0x1a8] sm:$0xff]
    %v294 = vld [vmem:[#allocation2 + $0x1b0] sm:$0xff]
    %v295 = vld [vmem:[#allocation2 + $0x1b8] sm:$0xff]
    %v296 = vld [vmem:[#allocation2 + $0x1c0] sm:$0xff]
    %v297 = vld [vmem:[#allocation2 + $0x1c8] sm:$0xff]
    %v298 = vld [vmem:[#allocation2 + $0x1d0] sm:$0xff]
    %v299 = vld [vmem:[#allocation2 + $0x1d8] sm:$0xff]
    %v300 = vld [vmem:[#allocation2 + $0x1e0] sm:$0xff]
    %v301 = vld [vmem:[#allocation2 + $0x1e8] sm:$0xff]
    %v302 = vld [vmem:[#allocation2 + $0x1f0] sm:$0xff]
    %v303 = vld [vmem:[#allocation2 + $0x1f8] sm:$0xff]
    %v304 = vld [vmem:[#allocation2 + $0x200] sm:$0xff]
    %v305 = vld [vmem:[#allocation2 + $0x208] sm:$0xff]
    %v306 = vld [vmem:[#allocation2 + $0x210] sm:$0xff]
    %v307 = vld [vmem:[#allocation2 + $0x218] sm:$0xff]
    %v308 = vld [vmem:[#allocation2 + $0x220] sm:$0xff]
    %v309 = vld [vmem:[#allocation2 + $0x228] sm:$0xff]
    %v310 = vld [vmem:[#allocation2 + $0x230] sm:$0xff]
    %v311 = vld [vmem:[#allocation2 + $0x238] sm:$0xff]
    %v312 = vld [vmem:[#allocation2 + $0x240] sm:$0xff]
    %v313 = vld [vmem:[#allocation2 + $0x248] sm:$0xff]
    %v314 = vld [vmem:[#allocation2 + $0x250] sm:$0xff]
    %v315 = vld [vmem:[#allocation2 + $0x258] sm:$0xff]
    %v316 = vld [vmem:[#allocation2 + $0x260] sm:$0xff]
    %v317 = vld [vmem:[#allocation2 + $0x268] sm:$0xff]
    %v318 = vld [vmem:[#allocation2 + $0x270] sm:$0xff]
    %v319 = vld [vmem:[#allocation2 + $0x278] sm:$0xff]
    %v320 = vld [vmem:[#allocation2 + $0x280] sm:$0xff]
    %v321 = vld [vmem:[#allocation2 + $0x288] sm:$0xff]
    %v322 = vld [vmem:[#allocation2 + $0x290] sm:$0xff]
    %v323 = vld [vmem:[#allocation2 + $0x298] sm:$0xff]
    %v324 = vld [vmem:[#allocation2 + $0x2a0] sm:$0xff]
    %v325 = vld [vmem:[#allocation2 + $0x2a8] sm:$0xff]
    %v326 = vld [vmem:[#allocation2 + $0x2b0] sm:$0xff]
    %v327 = vld [vmem:[#allocation2 + $0x2b8] sm:$0xff]
    %v328 = vld [vmem:[#allocation2 + $0x2c0] sm:$0xff]
    %v329 = vld [vmem:[#allocation2 + $0x2c8] sm:$0xff]
    %v330 = vld [vmem:[#allocation2 + $0x2d0] sm:$0xff]
    %v331 = vld [vmem:[#allocation2 + $0x2d8] sm:$0xff]
    %v332 = vld [vmem:[#allocation2 + $0x2e0] sm:$0xff]
    %v333 = vld [vmem:[#allocation2 + $0x2e8] sm:$0xff]
    %v334 = vld [vmem:[#allocation2 + $0x2f0] sm:$0xff]
    %v335 = vld [vmem:[#allocation2 + $0x2f8] sm:$0xff]
    %v336 = vld [vmem:[#allocation2 + $0x300] sm:$0xff]
    %v337 = vld [vmem:[#allocation2 + $0x308] sm:$0xff]
    %v338 = vld [vmem:[#allocation2 + $0x310] sm:$0xff]
    %v339 = vld [vmem:[#allocation2 + $0x318] sm:$0xff]
    %v340 = vld [vmem:[#allocation2 + $0x320] sm:$0xff]
    %v341 = vld [vmem:[#allocation2 + $0x328] sm:$0xff]
    %v342 = vld [vmem:[#allocation2 + $0x330] sm:$0xff]
    %v343 = vld [vmem:[#allocation2 + $0x338] sm:$0xff]
    %v344 = vld [vmem:[#allocation2 + $0x340] sm:$0xff]
    %v345 = vld [vmem:[#allocation2 + $0x348] sm:$0xff]
    %v346 = vld [vmem:[#allocation2 + $0x350] sm:$0xff]
    %v347 = vld [vmem:[#allocation2 + $0x358] sm:$0xff]
    %v348 = vld [vmem:[#allocation2 + $0x360] sm:$0xff]
    %v349 = vld [vmem:[#allocation2 + $0x368] sm:$0xff]
    %v350 = vld [vmem:[#allocation2 + $0x370] sm:$0xff]
    %v351 = vld [vmem:[#allocation2 + $0x378] sm:$0xff]
    %v352 = vld [vmem:[#allocation2 + $0x380] sm:$0xff]
    %v353 = vld [vmem:[#allocation2 + $0x388] sm:$0xff]
    %v354 = vld [vmem:[#allocation2 + $0x390] sm:$0xff]
    %v355 = vld [vmem:[#allocation2 + $0x398] sm:$0xff]
    %v356 = vld [vmem:[#allocation2 + $0x3a0] sm:$0xff]
    %v357 = vld [vmem:[#allocation2 + $0x3a8] sm:$0xff]
    %v358 = vld [vmem:[#allocation2 + $0x3b0] sm:$0xff]
    %v359 = vld [vmem:[#allocation2 + $0x3b8] sm:$0xff]
    %v360 = vld [vmem:[#allocation2 + $0x3c0] sm:$0xff]
    %v361 = vld [vmem:[#allocation2 + $0x3c8] sm:$0xff]
    %v362 = vld [vmem:[#allocation2 + $0x3d0] sm:$0xff]
    %v363 = vld [vmem:[#allocation2 + $0x3d8] sm:$0xff]
    %v364 = vld [vmem:[#allocation2 + $0x3e0] sm:$0xff]
    %v365 = vld [vmem:[#allocation2 + $0x3e8] sm:$0xff]
    %v366 = vld [vmem:[#allocation2 + $0x3f0] sm:$0xff]
    %v367 = vld [vmem:[#allocation2 + $0x3f8] sm:$0xff]
    %v368 = vpack.c.bf16 %v232, %v232
    %v369 = vpack.c.bf16 %v233, %v233
    %v370 = vpack.c.bf16 %v234, %v234
    %v371 = vpack.c.bf16 %v235, %v235
    %v372 = vld [vmem:[%s4] sm:$0xf]
    %v374 = vlaneseq
    %v375 = vshrl.u32 %v374, 7
    %v376 = vsub.s32 0, %v375
    %v377 = vrot.slane %v372, %v376
    %v378 = vlaneseq
    %v379 = vshrl.u32 %v378, 7
    %v380 = vsub.s32 1, %v379
    %v381 = vrot.slane %v372, %v380
    %v382 = vlaneseq
    %v383 = vshrl.u32 %v382, 7
    %v384 = vsub.s32 2, %v383
    %v385 = vrot.slane %v372, %v384
    %v386 = vlaneseq
    %v387 = vshrl.u32 %v386, 7
    %v388 = vsub.s32 3, %v387
    %v389 = vrot.slane %v372, %v388
    %v522 = vunpack.c.l.b16 %v240
    %v523 = vunpack.c.h.b16 %v240
    %v524 = vunpack.c.l.b16 %v241
    %v525 = vunpack.c.h.b16 %v241
    %v526 = vunpack.c.l.b16 %v242
    %v527 = vunpack.c.h.b16 %v242
    %v528 = vunpack.c.l.b16 %v243
    %v529 = vunpack.c.h.b16 %v243
    %v530 = vunpack.c.l.b16 %v244
    %v531 = vunpack.c.h.b16 %v244
    %v532 = vunpack.c.l.b16 %v245
    %v533 = vunpack.c.h.b16 %v245
    %v534 = vunpack.c.l.b16 %v246
    %v535 = vunpack.c.h.b16 %v246
    %v536 = vunpack.c.l.b16 %v247
    %v537 = vunpack.c.h.b16 %v247
    %v538 = vunpack.c.l.b16 %v248
    %v539 = vunpack.c.h.b16 %v248
    %v540 = vunpack.c.l.b16 %v249
    %v541 = vunpack.c.h.b16 %v249
    %v542 = vunpack.c.l.b16 %v250
    %v543 = vunpack.c.h.b16 %v250
    %v544 = vunpack.c.l.b16 %v251
    %v545 = vunpack.c.h.b16 %v251
    %v546 = vunpack.c.l.b16 %v252
    %v547 = vunpack.c.h.b16 %v252
    %v548 = vunpack.c.l.b16 %v253
    %v549 = vunpack.c.h.b16 %v253
    %v550 = vunpack.c.l.b16 %v254
    %v551 = vunpack.c.h.b16 %v254
    %v552 = vunpack.c.l.b16 %v255
    %v553 = vunpack.c.h.b16 %v255
    %v554 = vunpack.c.l.b16 %v256
    %v555 = vunpack.c.h.b16 %v256
    %v556 = vunpack.c.l.b16 %v257
    %v557 = vunpack.c.h.b16 %v257
    %v558 = vunpack.c.l.b16 %v258
    %v559 = vunpack.c.h.b16 %v258
    %v560 = vunpack.c.l.b16 %v259
    %v561 = vunpack.c.h.b16 %v259
    %v562 = vunpack.c.l.b16 %v260
    %v563 = vunpack.c.h.b16 %v260
    %v564 = vunpack.c.l.b16 %v261
    %v565 = vunpack.c.h.b16 %v261
    %v566 = vunpack.c.l.b16 %v262
    %v567 = vunpack.c.h.b16 %v262
    %v568 = vunpack.c.l.b16 %v263
    %v569 = vunpack.c.h.b16 %v263
    %v570 = vunpack.c.l.b16 %v264
    %v571 = vunpack.c.h.b16 %v264
    %v572 = vunpack.c.l.b16 %v265
    %v573 = vunpack.c.h.b16 %v265
    %v574 = vunpack.c.l.b16 %v266
    %v575 = vunpack.c.h.b16 %v266
    %v576 = vunpack.c.l.b16 %v267
    %v577 = vunpack.c.h.b16 %v267
    %v578 = vunpack.c.l.b16 %v268
    %v579 = vunpack.c.h.b16 %v268
    %v580 = vunpack.c.l.b16 %v269
    %v581 = vunpack.c.h.b16 %v269
    %v582 = vunpack.c.l.b16 %v270
    %v583 = vunpack.c.h.b16 %v270
    %v584 = vunpack.c.l.b16 %v271
    %v585 = vunpack.c.h.b16 %v271
    %v586 = vunpack.c.l.b16 %v272
    %v587 = vunpack.c.h.b16 %v272
    %v588 = vunpack.c.l.b16 %v273
    %v589 = vunpack.c.h.b16 %v273
    %v590 = vunpack.c.l.b16 %v274
    %v591 = vunpack.c.h.b16 %v274
    %v592 = vunpack.c.l.b16 %v275
    %v593 = vunpack.c.h.b16 %v275
    %v594 = vunpack.c.l.b16 %v276
    %v595 = vunpack.c.h.b16 %v276
    %v596 = vunpack.c.l.b16 %v277
    %v597 = vunpack.c.h.b16 %v277
    %v598 = vunpack.c.l.b16 %v278
    %v599 = vunpack.c.h.b16 %v278
    %v600 = vunpack.c.l.b16 %v279
    %v601 = vunpack.c.h.b16 %v279
    %v602 = vunpack.c.l.b16 %v280
    %v603 = vunpack.c.h.b16 %v280
    %v604 = vunpack.c.l.b16 %v281
    %v605 = vunpack.c.h.b16 %v281
    %v606 = vunpack.c.l.b16 %v282
    %v607 = vunpack.c.h.b16 %v282
    %v608 = vunpack.c.l.b16 %v283
    %v609 = vunpack.c.h.b16 %v283
    %v610 = vunpack.c.l.b16 %v284
    %v611 = vunpack.c.h.b16 %v284
    %v612 = vunpack.c.l.b16 %v285
    %v613 = vunpack.c.h.b16 %v285
    %v614 = vunpack.c.l.b16 %v286
    %v615 = vunpack.c.h.b16 %v286
    %v616 = vunpack.c.l.b16 %v287
    %v617 = vunpack.c.h.b16 %v287
    %v618 = vunpack.c.l.b16 %v288
    %v619 = vunpack.c.h.b16 %v288
    %v620 = vunpack.c.l.b16 %v289
    %v621 = vunpack.c.h.b16 %v289
    %v622 = vunpack.c.l.b16 %v290
    %v623 = vunpack.c.h.b16 %v290
    %v624 = vunpack.c.l.b16 %v291
    %v625 = vunpack.c.h.b16 %v291
    %v626 = vunpack.c.l.b16 %v292
    %v627 = vunpack.c.h.b16 %v292
    %v628 = vunpack.c.l.b16 %v293
    %v629 = vunpack.c.h.b16 %v293
    %v630 = vunpack.c.l.b16 %v294
    %v631 = vunpack.c.h.b16 %v294
    %v632 = vunpack.c.l.b16 %v295
    %v633 = vunpack.c.h.b16 %v295
    %v634 = vunpack.c.l.b16 %v296
    %v635 = vunpack.c.h.b16 %v296
    %v636 = vunpack.c.l.b16 %v297
    %v637 = vunpack.c.h.b16 %v297
    %v638 = vunpack.c.l.b16 %v298
    %v639 = vunpack.c.h.b16 %v298
    %v640 = vunpack.c.l.b16 %v299
    %v641 = vunpack.c.h.b16 %v299
    %v642 = vunpack.c.l.b16 %v300
    %v643 = vunpack.c.h.b16 %v300
    %v644 = vunpack.c.l.b16 %v301
    %v645 = vunpack.c.h.b16 %v301
    %v646 = vunpack.c.l.b16 %v302
    %v647 = vunpack.c.h.b16 %v302
    %v648 = vunpack.c.l.b16 %v303
    %v649 = vunpack.c.h.b16 %v303
    %v650 = vunpack.c.l.b16 %v304
    %v651 = vunpack.c.h.b16 %v304
    %v652 = vunpack.c.l.b16 %v305
    %v653 = vunpack.c.h.b16 %v305
    %v654 = vunpack.c.l.b16 %v306
    %v655 = vunpack.c.h.b16 %v306
    %v656 = vunpack.c.l.b16 %v307
    %v657 = vunpack.c.h.b16 %v307
    %v658 = vunpack.c.l.b16 %v308
    %v659 = vunpack.c.h.b16 %v308
    %v660 = vunpack.c.l.b16 %v309
    %v661 = vunpack.c.h.b16 %v309
    %v662 = vunpack.c.l.b16 %v310
    %v663 = vunpack.c.h.b16 %v310
    %v664 = vunpack.c.l.b16 %v311
    %v665 = vunpack.c.h.b16 %v311
    %v666 = vunpack.c.l.b16 %v312
    %v667 = vunpack.c.h.b16 %v312
    %v668 = vunpack.c.l.b16 %v313
    %v669 = vunpack.c.h.b16 %v313
    %v670 = vunpack.c.l.b16 %v314
    %v671 = vunpack.c.h.b16 %v314
    %v672 = vunpack.c.l.b16 %v315
    %v673 = vunpack.c.h.b16 %v315
    %v674 = vunpack.c.l.b16 %v316
    %v675 = vunpack.c.h.b16 %v316
    %v676 = vunpack.c.l.b16 %v317
    %v677 = vunpack.c.h.b16 %v317
    %v678 = vunpack.c.l.b16 %v318
    %v679 = vunpack.c.h.b16 %v318
    %v680 = vunpack.c.l.b16 %v319
    %v681 = vunpack.c.h.b16 %v319
    %v682 = vunpack.c.l.b16 %v320
    %v683 = vunpack.c.h.b16 %v320
    %v684 = vunpack.c.l.b16 %v321
    %v685 = vunpack.c.h.b16 %v321
    %v686 = vunpack.c.l.b16 %v322
    %v687 = vunpack.c.h.b16 %v322
    %v688 = vunpack.c.l.b16 %v323
    %v689 = vunpack.c.h.b16 %v323
    %v690 = vunpack.c.l.b16 %v324
    %v691 = vunpack.c.h.b16 %v324
    %v692 = vunpack.c.l.b16 %v325
    %v693 = vunpack.c.h.b16 %v325
    %v694 = vunpack.c.l.b16 %v326
    %v695 = vunpack.c.h.b16 %v326
    %v696 = vunpack.c.l.b16 %v327
    %v697 = vunpack.c.h.b16 %v327
    %v698 = vunpack.c.l.b16 %v328
    %v699 = vunpack.c.h.b16 %v328
    %v700 = vunpack.c.l.b16 %v329
    %v701 = vunpack.c.h.b16 %v329
    %v702 = vunpack.c.l.b16 %v330
    %v703 = vunpack.c.h.b16 %v330
    %v704 = vunpack.c.l.b16 %v331
    %v705 = vunpack.c.h.b16 %v331
    %v706 = vunpack.c.l.b16 %v332
    %v707 = vunpack.c.h.b16 %v332
    %v708 = vunpack.c.l.b16 %v333
    %v709 = vunpack.c.h.b16 %v333
    %v710 = vunpack.c.l.b16 %v334
    %v711 = vunpack.c.h.b16 %v334
    %v712 = vunpack.c.l.b16 %v335
    %v713 = vunpack.c.h.b16 %v335
    %v714 = vunpack.c.l.b16 %v336
    %v715 = vunpack.c.h.b16 %v336
    %v716 = vunpack.c.l.b16 %v337
    %v717 = vunpack.c.h.b16 %v337
    %v718 = vunpack.c.l.b16 %v338
    %v719 = vunpack.c.h.b16 %v338
    %v720 = vunpack.c.l.b16 %v339
    %v721 = vunpack.c.h.b16 %v339
    %v722 = vunpack.c.l.b16 %v340
    %v723 = vunpack.c.h.b16 %v340
    %v724 = vunpack.c.l.b16 %v341
    %v725 = vunpack.c.h.b16 %v341
    %v726 = vunpack.c.l.b16 %v342
    %v727 = vunpack.c.h.b16 %v342
    %v728 = vunpack.c.l.b16 %v343
    %v729 = vunpack.c.h.b16 %v343
    %v730 = vunpack.c.l.b16 %v344
    %v731 = vunpack.c.h.b16 %v344
    %v732 = vunpack.c.l.b16 %v345
    %v733 = vunpack.c.h.b16 %v345
    %v734 = vunpack.c.l.b16 %v346
    %v735 = vunpack.c.h.b16 %v346
    %v736 = vunpack.c.l.b16 %v347
    %v737 = vunpack.c.h.b16 %v347
    %v738 = vunpack.c.l.b16 %v348
    %v739 = vunpack.c.h.b16 %v348
    %v740 = vunpack.c.l.b16 %v349
    %v741 = vunpack.c.h.b16 %v349
    %v742 = vunpack.c.l.b16 %v350
    %v743 = vunpack.c.h.b16 %v350
    %v744 = vunpack.c.l.b16 %v351
    %v745 = vunpack.c.h.b16 %v351
    %v746 = vunpack.c.l.b16 %v352
    %v747 = vunpack.c.h.b16 %v352
    %v748 = vunpack.c.l.b16 %v353
    %v749 = vunpack.c.h.b16 %v353
    %v750 = vunpack.c.l.b16 %v354
    %v751 = vunpack.c.h.b16 %v354
    %v752 = vunpack.c.l.b16 %v355
    %v753 = vunpack.c.h.b16 %v355
    %v754 = vunpack.c.l.b16 %v356
    %v755 = vunpack.c.h.b16 %v356
    %v756 = vunpack.c.l.b16 %v357
    %v757 = vunpack.c.h.b16 %v357
    %v758 = vunpack.c.l.b16 %v358
    %v759 = vunpack.c.h.b16 %v358
    %v760 = vunpack.c.l.b16 %v359
    %v761 = vunpack.c.h.b16 %v359
    %v762 = vunpack.c.l.b16 %v360
    %v763 = vunpack.c.h.b16 %v360
    %v764 = vunpack.c.l.b16 %v361
    %v765 = vunpack.c.h.b16 %v361
    %v766 = vunpack.c.l.b16 %v362
    %v767 = vunpack.c.h.b16 %v362
    %v768 = vunpack.c.l.b16 %v363
    %v769 = vunpack.c.h.b16 %v363
    %v770 = vunpack.c.l.b16 %v364
    %v771 = vunpack.c.h.b16 %v364
    %v772 = vunpack.c.l.b16 %v365
    %v773 = vunpack.c.h.b16 %v365
    %v774 = vunpack.c.l.b16 %v366
    %v775 = vunpack.c.h.b16 %v366
    %v776 = vunpack.c.l.b16 %v367
    %v777 = vunpack.c.h.b16 %v367
    %v778 = vpack.c.b16 %v526, %v522
    %v779 = vpack.c.b16 %v527, %v523
    %v780 = vpack.c.b16 %v528, %v524
    %v781 = vpack.c.b16 %v529, %v525
    %v782 = vpack.c.b16 %v534, %v530
    %v783 = vpack.c.b16 %v535, %v531
    %v784 = vpack.c.b16 %v536, %v532
    %v785 = vpack.c.b16 %v537, %v533
    %v786 = vpack.c.b16 %v542, %v538
    %v787 = vpack.c.b16 %v543, %v539
    %v788 = vpack.c.b16 %v544, %v540
    %v789 = vpack.c.b16 %v545, %v541
    %v790 = vpack.c.b16 %v550, %v546
    %v791 = vpack.c.b16 %v551, %v547
    %v792 = vpack.c.b16 %v552, %v548
    %v793 = vpack.c.b16 %v553, %v549
    %v794 = vpack.c.b16 %v558, %v554
    %v795 = vpack.c.b16 %v559, %v555
    %v796 = vpack.c.b16 %v560, %v556
    %v797 = vpack.c.b16 %v561, %v557
    %v798 = vpack.c.b16 %v566, %v562
    %v799 = vpack.c.b16 %v567, %v563
    %v800 = vpack.c.b16 %v568, %v564
    %v801 = vpack.c.b16 %v569, %v565
    %v802 = vpack.c.b16 %v574, %v570
    %v803 = vpack.c.b16 %v575, %v571
    %v804 = vpack.c.b16 %v576, %v572
    %v805 = vpack.c.b16 %v577, %v573
    %v806 = vpack.c.b16 %v582, %v578
    %v807 = vpack.c.b16 %v583, %v579
    %v808 = vpack.c.b16 %v584, %v580
    %v809 = vpack.c.b16 %v585, %v581
    %v810 = vpack.c.b16 %v590, %v586
    %v811 = vpack.c.b16 %v591, %v587
    %v812 = vpack.c.b16 %v592, %v588
    %v813 = vpack.c.b16 %v593, %v589
    %v814 = vpack.c.b16 %v598, %v594
    %v815 = vpack.c.b16 %v599, %v595
    %v816 = vpack.c.b16 %v600, %v596
    %v817 = vpack.c.b16 %v601, %v597
    %v818 = vpack.c.b16 %v606, %v602
    %v819 = vpack.c.b16 %v607, %v603
    %v820 = vpack.c.b16 %v608, %v604
    %v821 = vpack.c.b16 %v609, %v605
    %v822 = vpack.c.b16 %v614, %v610
    %v823 = vpack.c.b16 %v615, %v611
    %v824 = vpack.c.b16 %v616, %v612
    %v825 = vpack.c.b16 %v617, %v613
    %v826 = vpack.c.b16 %v622, %v618
    %v827 = vpack.c.b16 %v623, %v619
    %v828 = vpack.c.b16 %v624, %v620
    %v829 = vpack.c.b16 %v625, %v621
    %v830 = vpack.c.b16 %v630, %v626
    %v831 = vpack.c.b16 %v631, %v627
    %v832 = vpack.c.b16 %v632, %v628
    %v833 = vpack.c.b16 %v633, %v629
    %v834 = vpack.c.b16 %v638, %v634
    %v835 = vpack.c.b16 %v639, %v635
    %v836 = vpack.c.b16 %v640, %v636
    %v837 = vpack.c.b16 %v641, %v637
    %v838 = vpack.c.b16 %v646, %v642
    %v839 = vpack.c.b16 %v647, %v643
    %v840 = vpack.c.b16 %v648, %v644
    %v841 = vpack.c.b16 %v649, %v645
    %v842 = vpack.c.b16 %v654, %v650
    %v843 = vpack.c.b16 %v655, %v651
    %v844 = vpack.c.b16 %v656, %v652
    %v845 = vpack.c.b16 %v657, %v653
    %v846 = vpack.c.b16 %v662, %v658
    %v847 = vpack.c.b16 %v663, %v659
    %v848 = vpack.c.b16 %v664, %v660
    %v849 = vpack.c.b16 %v665, %v661
    %v850 = vpack.c.b16 %v670, %v666
    %v851 = vpack.c.b16 %v671, %v667
    %v852 = vpack.c.b16 %v672, %v668
    %v853 = vpack.c.b16 %v673, %v669
    %v854 = vpack.c.b16 %v678, %v674
    %v855 = vpack.c.b16 %v679, %v675
    %v856 = vpack.c.b16 %v680, %v676
    %v857 = vpack.c.b16 %v681, %v677
    %v858 = vpack.c.b16 %v686, %v682
    %v859 = vpack.c.b16 %v687, %v683
    %v860 = vpack.c.b16 %v688, %v684
    %v861 = vpack.c.b16 %v689, %v685
    %v862 = vpack.c.b16 %v694, %v690
    %v863 = vpack.c.b16 %v695, %v691
    %v864 = vpack.c.b16 %v696, %v692
    %v865 = vpack.c.b16 %v697, %v693
    %v866 = vpack.c.b16 %v702, %v698
    %v867 = vpack.c.b16 %v703, %v699
    %v868 = vpack.c.b16 %v704, %v700
    %v869 = vpack.c.b16 %v705, %v701
    %v870 = vpack.c.b16 %v710, %v706
    %v871 = vpack.c.b16 %v711, %v707
    %v872 = vpack.c.b16 %v712, %v708
    %v873 = vpack.c.b16 %v713, %v709
    %v874 = vpack.c.b16 %v718, %v714
    %v875 = vpack.c.b16 %v719, %v715
    %v876 = vpack.c.b16 %v720, %v716
    %v877 = vpack.c.b16 %v721, %v717
    %v878 = vpack.c.b16 %v726, %v722
    %v879 = vpack.c.b16 %v727, %v723
    %v880 = vpack.c.b16 %v728, %v724
    %v881 = vpack.c.b16 %v729, %v725
    %v882 = vpack.c.b16 %v734, %v730
    %v883 = vpack.c.b16 %v735, %v731
    %v884 = vpack.c.b16 %v736, %v732
    %v885 = vpack.c.b16 %v737, %v733
    %v886 = vpack.c.b16 %v742, %v738
    %v887 = vpack.c.b16 %v743, %v739
    %v888 = vpack.c.b16 %v744, %v740
    %v889 = vpack.c.b16 %v745, %v741
    %v890 = vpack.c.b16 %v750, %v746
    %v891 = vpack.c.b16 %v751, %v747
    %v892 = vpack.c.b16 %v752, %v748
    %v893 = vpack.c.b16 %v753, %v749
    %v894 = vpack.c.b16 %v758, %v754
    %v895 = vpack.c.b16 %v759, %v755
    %v896 = vpack.c.b16 %v760, %v756
    %v897 = vpack.c.b16 %v761, %v757
    %v898 = vpack.c.b16 %v766, %v762
    %v899 = vpack.c.b16 %v767, %v763
    %v900 = vpack.c.b16 %v768, %v764
    %v901 = vpack.c.b16 %v769, %v765
    %v902 = vpack.c.b16 %v774, %v770
    %v903 = vpack.c.b16 %v775, %v771
    %v904 = vpack.c.b16 %v776, %v772
    %v905 = vpack.c.b16 %v777, %v773
    %1034 = vmatprep.subr.bf16.mxu0 %v807
    %1035 = vmatpush1.bf16.msra.mxu0 %v806
    %1036 = vmatprep.subr.bf16.mxu0 %v803
    %1037 = vmatpush1.bf16.msra.mxu0 %v802
    %1038 = vmatprep.subr.bf16.mxu0 %v799
    %1039 = vmatpush1.bf16.msra.mxu0 %v798
    %1040 = vmatprep.subr.bf16.mxu0 %v795
    %1041 = vmatpush1.bf16.msra.mxu0 %v794
    %1042 = vmatprep.subr.bf16.mxu0 %v791
    %1043 = vmatpush1.bf16.msra.mxu0 %v790
    %1044 = vmatprep.subr.bf16.mxu0 %v787
    %1045 = vmatpush1.bf16.msra.mxu0 %v786
    %1046 = vmatprep.subr.bf16.mxu0 %v783
    %1047 = vmatpush1.bf16.msra.mxu0 %v782
    %1048 = vmatprep.subr.bf16.mxu0 %v779
    %1049 = vmatpush1.bf16.msra.mxu0 %v778
    %1050 = vmatprep.subr.bf16.mxu0 %v839
    %1051 = vmatpush2.bf16.msra.mxu0 %v838
    %1052 = vmatprep.subr.bf16.mxu0 %v835
    %1053 = vmatpush2.bf16.msra.mxu0 %v834
    %1054 = vmatprep.subr.bf16.mxu0 %v831
    %1055 = vmatpush2.bf16.msra.mxu0 %v830
    %1056 = vmatprep.subr.bf16.mxu0 %v827
    %1057 = vmatpush2.bf16.msra.mxu0 %v826
    %1058 = vmatprep.subr.bf16.mxu0 %v823
    %1059 = vmatpush2.bf16.msra.mxu0 %v822
    %1060 = vmatprep.subr.bf16.mxu0 %v819
    %1061 = vmatpush2.bf16.msra.mxu0 %v818
    %1062 = vmatprep.subr.bf16.mxu0 %v815
    %1063 = vmatpush2.bf16.msra.mxu0 %v814
    %1064 = vmatprep.subr.bf16.mxu0 %v811
    %1065 = vmatpush2.bf16.msra.mxu0 %v810
    %1066 = vmatprep.mubr.bf16.mxu0 %v369
    %1067 = vmatmul.mubr.bf16.gmra.mxu0 %v368
    %v1068 = vpop.f32.mrf.mxu0
    %v1069 = vadd.f32 %v377, %v1068
    %v1070 = vpop.f32.mrf.mxu0
    %v1071 = vadd.f32 %v381, %v1070
    %v1072 = vpop.f32.mrf.mxu0
    %v1073 = vpop.f32.mrf.mxu0
    %1074 = vdwg.mxu0
    %1075 = vmatprep.subr.bf16.mxu0 %v871
    %1076 = vmatpush1.bf16.msra.mxu0 %v870
    %1077 = vmatprep.subr.bf16.mxu0 %v867
    %1078 = vmatpush1.bf16.msra.mxu0 %v866
    %1079 = vmatprep.subr.bf16.mxu0 %v863
    %1080 = vmatpush1.bf16.msra.mxu0 %v862
    %1081 = vmatprep.subr.bf16.mxu0 %v859
    %1082 = vmatpush1.bf16.msra.mxu0 %v858
    %1083 = vmatprep.subr.bf16.mxu0 %v855
    %1084 = vmatpush1.bf16.msra.mxu0 %v854
    %1085 = vmatprep.subr.bf16.mxu0 %v851
    %1086 = vmatpush1.bf16.msra.mxu0 %v850
    %1087 = vmatprep.subr.bf16.mxu0 %v847
    %1088 = vmatpush1.bf16.msra.mxu0 %v846
    %1089 = vmatprep.subr.bf16.mxu0 %v843
    %1090 = vmatpush1.bf16.msra.mxu0 %v842
    %1091 = vmatprep.subr.bf16.mxu0 %v903
    %1092 = vmatpush2.bf16.msra.mxu0 %v902
    %1093 = vmatprep.subr.bf16.mxu0 %v899
    %1094 = vmatpush2.bf16.msra.mxu0 %v898
    %1095 = vmatprep.subr.bf16.mxu0 %v895
    %1096 = vmatpush2.bf16.msra.mxu0 %v894
    %1097 = vmatprep.subr.bf16.mxu0 %v891
    %1098 = vmatpush2.bf16.msra.mxu0 %v890
    %1099 = vmatprep.subr.bf16.mxu0 %v887
    %1100 = vmatpush2.bf16.msra.mxu0 %v886
    %1101 = vmatprep.subr.bf16.mxu0 %v883
    %1102 = vmatpush2.bf16.msra.mxu0 %v882
    %1103 = vmatprep.subr.bf16.mxu0 %v879
    %1104 = vmatpush2.bf16.msra.mxu0 %v878
    %1105 = vmatprep.subr.bf16.mxu0 %v875
    %1106 = vmatpush2.bf16.msra.mxu0 %v874
    %1107 = vmatprep.mubr.bf16.mxu0 %v371
    %1108 = vmatmul.mubr.bf16.gmra.mxu0 %v370
    %v1109 = vpop.f32.mrf.mxu0
    %v1110 = vadd.f32 %v1069, %v1109
    %v1111 = vpop.f32.mrf.mxu0
    %v1112 = vadd.f32 %v1071, %v1111
    %v1113 = vpop.f32.mrf.mxu0
    %v1114 = vpop.f32.mrf.mxu0
    %1115 = vdwg.mxu0
    %1116 = vmatprep.subr.bf16.mxu0 %v809
    %1117 = vmatpush1.bf16.msra.mxu0 %v808
    %1118 = vmatprep.subr.bf16.mxu0 %v805
    %1119 = vmatpush1.bf16.msra.mxu0 %v804
    %1120 = vmatprep.subr.bf16.mxu0 %v801
    %1121 = vmatpush1.bf16.msra.mxu0 %v800
    %1122 = vmatprep.subr.bf16.mxu0 %v797
    %1123 = vmatpush1.bf16.msra.mxu0 %v796
    %1124 = vmatprep.subr.bf16.mxu0 %v793
    %1125 = vmatpush1.bf16.msra.mxu0 %v792
    %1126 = vmatprep.subr.bf16.mxu0 %v789
    %1127 = vmatpush1.bf16.msra.mxu0 %v788
    %1128 = vmatprep.subr.bf16.mxu0 %v785
    %1129 = vmatpush1.bf16.msra.mxu0 %v784
    %1130 = vmatprep.subr.bf16.mxu0 %v781
    %1131 = vmatpush1.bf16.msra.mxu0 %v780
    %1132 = vmatprep.subr.bf16.mxu0 %v841
    %1133 = vmatpush2.bf16.msra.mxu0 %v840
    %1134 = vmatprep.subr.bf16.mxu0 %v837
    %1135 = vmatpush2.bf16.msra.mxu0 %v836
    %1136 = vmatprep.subr.bf16.mxu0 %v833
    %1137 = vmatpush2.bf16.msra.mxu0 %v832
    %1138 = vmatprep.subr.bf16.mxu0 %v829
    %1139 = vmatpush2.bf16.msra.mxu0 %v828
    %1140 = vmatprep.subr.bf16.mxu0 %v825
    %1141 = vmatpush2.bf16.msra.mxu0 %v824
    %1142 = vmatprep.subr.bf16.mxu0 %v821
    %1143 = vmatpush2.bf16.msra.mxu0 %v820
    %1144 = vmatprep.subr.bf16.mxu0 %v817
    %1145 = vmatpush2.bf16.msra.mxu0 %v816
    %1146 = vmatprep.subr.bf16.mxu0 %v813
    %1147 = vmatpush2.bf16.msra.mxu0 %v812
    %1148 = vmatprep.mubr.bf16.mxu0 %v369
    %1149 = vmatmul.mubr.bf16.gmra.mxu0 %v368
    %v1150 = vpop.f32.mrf.mxu0
    %v1151 = vadd.f32 %v385, %v1150
    %v1152 = vpop.f32.mrf.mxu0
    %v1153 = vadd.f32 %v389, %v1152
    %v1154 = vpop.f32.mrf.mxu0
    %v1155 = vpop.f32.mrf.mxu0
    %1156 = vdwg.mxu0
    %1157 = vmatprep.subr.bf16.mxu0 %v873
    %1158 = vmatpush1.bf16.msra.mxu0 %v872
    %1159 = vmatprep.subr.bf16.mxu0 %v869
    %1160 = vmatpush1.bf16.msra.mxu0 %v868
    %1161 = vmatprep.subr.bf16.mxu0 %v865
    %1162 = vmatpush1.bf16.msra.mxu0 %v864
    %1163 = vmatprep.subr.bf16.mxu0 %v861
    %1164 = vmatpush1.bf16.msra.mxu0 %v860
    %1165 = vmatprep.subr.bf16.mxu0 %v857
    %1166 = vmatpush1.bf16.msra.mxu0 %v856
    %1167 = vmatprep.subr.bf16.mxu0 %v853
    %1168 = vmatpush1.bf16.msra.mxu0 %v852
    %1169 = vmatprep.subr.bf16.mxu0 %v849
    %1170 = vmatpush1.bf16.msra.mxu0 %v848
    %1171 = vmatprep.subr.bf16.mxu0 %v845
    %1172 = vmatpush1.bf16.msra.mxu0 %v844
    %1173 = vmatprep.subr.bf16.mxu0 %v905
    %1174 = vmatpush2.bf16.msra.mxu0 %v904
    %1175 = vmatprep.subr.bf16.mxu0 %v901
    %1176 = vmatpush2.bf16.msra.mxu0 %v900
    %1177 = vmatprep.subr.bf16.mxu0 %v897
    %1178 = vmatpush2.bf16.msra.mxu0 %v896
    %1179 = vmatprep.subr.bf16.mxu0 %v893
    %1180 = vmatpush2.bf16.msra.mxu0 %v892
    %1181 = vmatprep.subr.bf16.mxu0 %v889
    %1182 = vmatpush2.bf16.msra.mxu0 %v888
    %1183 = vmatprep.subr.bf16.mxu0 %v885
    %1184 = vmatpush2.bf16.msra.mxu0 %v884
    %1185 = vmatprep.subr.bf16.mxu0 %v881
    %1186 = vmatpush2.bf16.msra.mxu0 %v880
    %1187 = vmatprep.subr.bf16.mxu0 %v877
    %1188 = vmatpush2.bf16.msra.mxu0 %v876
    %1189 = vmatprep.mubr.bf16.mxu0 %v371
    %1190 = vmatmul.mubr.bf16.gmra.mxu0 %v370
    %v1191 = vpop.f32.mrf.mxu0
    %v1192 = vadd.f32 %v1151, %v1191
    %v1193 = vpop.f32.mrf.mxu0
    %v1194 = vadd.f32 %v1153, %v1193
    %v1195 = vpop.f32.mrf.mxu0
    %v1196 = vpop.f32.mrf.mxu0
    %1197 = vdwg.mxu0
    %v1198 = vmax.f32 %v1110, 0.0
    %v1199 = vmax.f32 %v1112, 0.0
    %v1200 = vmax.f32 %v1192, 0.0
    %v1201 = vmax.f32 %v1194, 0.0
    %v1202 = vld [vmem:[#allocation9] sm:$0xf]
    %v1204 = vlaneseq
    %v1205 = vshrl.u32 %v1204, 7
    %v1206 = vsub.s32 0, %v1205
    %v1207 = vrot.slane %v1202, %v1206
    %v1208 = vlaneseq
    %v1209 = vshrl.u32 %v1208, 7
    %v1210 = vsub.s32 1, %v1209
    %v1211 = vrot.slane %v1202, %v1210
    %v1212 = vlaneseq
    %v1213 = vshrl.u32 %v1212, 7
    %v1214 = vsub.s32 2, %v1213
    %v1215 = vrot.slane %v1202, %v1214
    %v1216 = vlaneseq
    %v1217 = vshrl.u32 %v1216, 7
    %v1218 = vsub.s32 3, %v1217
    %v1219 = vrot.slane %v1202, %v1218
    %v1224 = vmul.f32 %v1198, %v1207
    %v1225 = vmul.f32 %v1199, %v1211
    %v1226 = vmul.f32 %v1200, %v1215
    %v1227 = vmul.f32 %v1201, %v1219
    %v1228 = vadd.f32 %v1224, %v1225
    %v1229 = vadd.f32 %v1228, %v1226
    %v1230 = vadd.f32 %v1229, %v1227
    %1231 = vadd.xlane.f32.xlu0 %v1230
    %v1232 = vpop.xlane.xlu0 %1231
    %s1233 = sld [smem:[#allocation4]]
    %v1234 = vstv %s1233
    %v1235 = vadd.f32 %v1232, %v1234
    %vm1236 = vcmask 7168
    %1237 = vst.msk [vmem:[%s7] sm:$0xff] %vm1236, %v1235
    // Predicated region
    $region42: #{tpu_custom_call.1} parent=1 // pred_check
      _
    $region43: #{tpu_custom_call.1} parent=1 // pred_check_branch
      %1239 = sbr.rel (0) target = $region45
    $region44: #{tpu_custom_call.1} parent=1 // pred_region
      _
    $region45: #{tpu_custom_call.1} parent=1 // pred_fallthru
      _
    // Predicated region
    $region46: #{tpu_custom_call.1} parent=1 // pred_check
      _
    $region47: #{tpu_custom_call.1} parent=1 // pred_check_branch
      %1241 = sbr.rel (0) target = $region49
    $region48: #{tpu_custom_call.1} parent=1 // pred_region
      _
    $region49: #{tpu_custom_call.1} parent=1 // pred_fallthru
      _
    %1242 = vsyncpa [#allocation6], 1
    %1243 = vsyncpa [#allocation8], 1
  %1244 = vsyncmov [#allocation3]
  %s1245 = vpop.sfrf %1244
  %p1246 = scmp.eq.s32.totalorder %s1245, 0
  %p1247 = pneg %p1246
  %1249 = shalt.err (%p1247)

</llo_original>
